<compile_context>
chip_gen: v7x
topology: tpu7x:2x2x1
jax: 0.10.0
libtpu: 0.0.40
codegen_flags: <defaults>
</compile_context>

<pallas_src>
import math

import jax
import jax.numpy as jnp
from jax.experimental import pallas as pl
from jax.experimental.pallas import tpu as pltpu

EPS = 1e-5           # nn.BatchNorm1d default eps
NEG_SLOPE = 0.01     # nn.LeakyReLU default negative_slope
VMEM_LIMIT = 32 * 1024 * 1024   # scoped-VMEM budget safe on v5e/v6e/v7x


def _leaky_relu(x):
    return jnp.where(x > 0, x, NEG_SLOPE * x)


# ----------------------------------------------------------------------------
# Single fused BasicBlock kernel.
# ----------------------------------------------------------------------------
def make_block_kernel(B, Lin, Cin, Cpl, K, stride, pad, has_ds):
    Lout = (Lin + 2 * pad - K) // stride + 1

    def build_col(col_ref, get_src, Lsrc, C, conv_stride):
        """Assemble the im2col LHS (B*Lout, K*C) with zero padding via K
        shifted stores per sample.  All offsets are static Python ints, so
        this unrolls at trace time into a handful of plain VMEM stores."""
        for b in range(B):
            row0 = b * Lout
            for k in range(K):
                lane = k * C
                lo = max(0, (pad - k + conv_stride - 1) // conv_stride)
                hi = min(Lout - 1, (Lsrc - 1 + pad - k) // conv_stride)
                n = hi - lo + 1
                if n <= 0:   # tap entirely in the zero padding (not hit here)
                    col_ref[pl.ds(row0, Lout), pl.ds(lane, C)] = (
                        jnp.zeros((Lout, C), col_ref.dtype))
                    continue
                start = k - pad + conv_stride * lo
                if lo > 0:                               # leading pad rows
                    col_ref[pl.ds(row0, lo), pl.ds(lane, C)] = (
                        jnp.zeros((lo, C), col_ref.dtype))
                if hi < Lout - 1:                        # trailing pad rows
                    nz = Lout - 1 - hi
                    col_ref[pl.ds(row0 + hi + 1, nz), pl.ds(lane, C)] = (
                        jnp.zeros((nz, C), col_ref.dtype))
                col_ref[pl.ds(row0 + lo, n), pl.ds(lane, C)] = get_src(b, start, n)

    def bn_train(y, gamma, beta):
        # Training-mode BatchNorm over (batch*length) per channel, computed
        # fully in-kernel; centered variance for numerical robustness.
        mean = jnp.mean(y, axis=0, keepdims=True)
        var = jnp.mean(jnp.square(y - mean), axis=0, keepdims=True)
        return (y - mean) * (gamma * jax.lax.rsqrt(var + EPS)) + beta

    def kernel(*refs):
        it = iter(refs)
        x_ref = next(it)                               # (B*Lin, Cin) f32
        w1_ref = next(it)                              # (K*Cin, Cpl) bf16
        w2_ref = next(it)                              # (K*Cpl, Cpl) bf16
        bn_ref = next(it)                              # (4, Cpl) f32 [g1,b1,g2,b2]
        dw_ref = next(it) if has_ds else None          # (Cin, Cpl) bf16
        dbn_ref = next(it) if has_ds else None         # (2, Cpl) f32 [gd,bd]
        out_ref = next(it)                             # (B*Lout, Cpl) f32
        col1_ref = next(it)                            # (B*Lout, K*Cin) f32 scratch
        col2_ref = next(it)                            # (B*Lout, K*Cpl) f32 scratch

        # -------- conv1: im2col + one MXU matmul (bias cancelled by BN) -----
        def x_rows(b, start, n):
            if stride == 1:
                return x_ref[pl.ds(b * Lin + start, n), :]
            return x_ref[pl.ds(b * Lin + start, n, stride=stride), :]

        build_col(col1_ref, x_rows, Lin, Cin, stride)
        y1 = jnp.dot(col1_ref[...].astype(jnp.bfloat16), w1_ref[...],
                     preferred_element_type=jnp.float32)        # (B*Lout, Cpl)

        # -------- bn1 + LeakyReLU, fused in VMEM -----------------------------
        h1 = _leaky_relu(bn_train(y1, bn_ref[0:1, :], bn_ref[1:2, :]))

        # -------- conv2: im2col over h1 + one MXU matmul ---------------------
        def h1_rows(b, start, n):
            r0 = b * Lout + start                      # static value slice
            return h1[r0:r0 + n, :]

        build_col(col2_ref, h1_rows, Lout, Cpl, 1)
        y2 = jnp.dot(col2_ref[...].astype(jnp.bfloat16), w2_ref[...],
                     preferred_element_type=jnp.float32)
        z2 = bn_train(y2, bn_ref[2:3, :], bn_ref[3:4, :])

        # -------- residual branch -------------------------------------------
        if has_ds:
            # 1x1 stride-s downsample conv: its LHS rows are exactly the
            # centre tap (k == pad) of conv1's im2col -> reuse, no extra DMA.
            lhs_d = col1_ref[:, pl.ds(pad * Cin, Cin)].astype(jnp.bfloat16)
            yd = jnp.dot(lhs_d, dw_ref[...], preferred_element_type=jnp.float32)
            res = bn_train(yd, dbn_ref[0:1, :], dbn_ref[1:2, :])
        else:
            res = x_ref[...]                           # identity residual

        out_ref[...] = _leaky_relu(z2 + res)

    return kernel


# ----------------------------------------------------------------------------
# Wrapper: layout plumbing + pallas_call.
# ----------------------------------------------------------------------------
def basic_block_forward(x_blc, p):
    """x_blc: (B, L, Cin) channels-last f32.  Returns (B, Lout, planes) f32."""
    B, L, Cin = x_blc.shape
    stride = p["stride"]
    Cpl, _, K = p["conv1_w"].shape
    pad = K // 2
    Lout = (L + 2 * pad - K) // stride + 1
    has_ds = "ds_w" in p

    x2d = x_blc.reshape(B * L, Cin).astype(jnp.float32)
    # im2col-flattened weights: w[k*Cin + c, o] = conv_w[o, c, k]
    w1 = jnp.transpose(p["conv1_w"], (2, 1, 0)).reshape(K * Cin, Cpl).astype(jnp.bfloat16)
    w2 = jnp.transpose(p["conv2_w"], (2, 1, 0)).reshape(K * Cpl, Cpl).astype(jnp.bfloat16)
    bn = jnp.stack([p["bn1_g"], p["bn1_b"], p["bn2_g"], p["bn2_b"]], 0).astype(jnp.float32)

    def full2d(shape):
        return pl.BlockSpec(shape, lambda i: (0, 0))

    inputs = [x2d, w1, w2, bn]
    in_specs = [full2d((B * L, Cin)), full2d((K * Cin, Cpl)),
                full2d((K * Cpl, Cpl)), full2d((4, Cpl))]
    if has_ds:
        dw = jnp.transpose(p["ds_w"], (2, 1, 0)).reshape(Cin, Cpl).astype(jnp.bfloat16)
        dbn = jnp.stack([p["ds_bn_g"], p["ds_bn_b"]], 0).astype(jnp.float32)
        inputs += [dw, dbn]
        in_specs += [full2d((Cin, Cpl)), full2d((2, Cpl))]

    kernel = make_block_kernel(B, L, Cin, Cpl, K, stride, pad, has_ds)
    out = pl.pallas_call(
        kernel,
        out_shape=jax.ShapeDtypeStruct((B * Lout, Cpl), jnp.float32),
        grid=(1,),
        in_specs=in_specs,
        out_specs=full2d((B * Lout, Cpl)),
        scratch_shapes=[pltpu.VMEM((B * Lout, K * Cin), jnp.float32),
                        pltpu.VMEM((B * Lout, K * Cpl), jnp.float32)],
        compiler_params=pltpu.CompilerParams(
            dimension_semantics=("arbitrary",),
            vmem_limit_bytes=VMEM_LIMIT),
    )(*inputs)
    return out.reshape(B, Lout, Cpl)


def basic_block_ncl(x_ncl, p):
    """PyTorch-layout interface: (B, Cin, L) -> (B, planes, Lout)."""
    x = jnp.transpose(x_ncl, (0, 2, 1)).astype(jnp.float32)
    y = basic_block_forward(x, p)
    return jnp.transpose(y, (0, 2, 1))


# ----------------------------------------------------------------------------
# Deterministic parameter construction.
# ----------------------------------------------------------------------------
def xavier_normal(key, shape):
    cout, cin, k = shape
    std = math.sqrt(2.0 / (cin * k + cout * k))
    return std * jax.random.normal(key, shape, jnp.float32)


def make_block_params(key, inplanes, planes, stride, ksize=3):
    keys = jax.random.split(key, 5)
    p = {
        "conv1_w": xavier_normal(keys[0], (planes, inplanes, ksize)),
        "conv1_b": 0.01 * jax.random.normal(keys[1], (planes,), jnp.float32),
        "bn1_g": jnp.ones((planes,), jnp.float32),
        "bn1_b": jnp.zeros((planes,), jnp.float32),
        "conv2_w": xavier_normal(keys[2], (planes, planes, ksize)),
        "conv2_b": 0.01 * jax.random.normal(keys[3], (planes,), jnp.float32),
        "bn2_g": jnp.ones((planes,), jnp.float32),
        "bn2_b": jnp.zeros((planes,), jnp.float32),
        "stride": stride,
    }
    if stride != 1 or inplanes != planes:
        p["ds_w"] = xavier_normal(keys[4], (planes, inplanes, 1))   # bias=False
        p["ds_bn_g"] = jnp.ones((planes,), jnp.float32)
        p["ds_bn_b"] = jnp.zeros((planes,), jnp.float32)
    return p


# ----------------------------------------------------------------------------
# Pure-JAX reference (f32, uses the conv bias explicitly) for validation.
# ----------------------------------------------------------------------------
def _ref_conv1d(x_ncl, w, b, stride, padding):
    out = jax.lax.conv_general_dilated(
        x_ncl, w, window_strides=(stride,), padding=[(padding, padding)],
        dimension_numbers=("NCH", "OIH", "NCH"),
        precision=jax.lax.Precision.HIGHEST)
    return out + b[None, :, None]


def _ref_bn_train(y, gamma, beta):
    mean = jnp.mean(y, axis=(0, 2), keepdims=True)
    var = jnp.mean(jnp.square(y - mean), axis=(0, 2), keepdims=True)
    return ((y - mean) * jax.lax.rsqrt(var + EPS) * gamma[None, :, None]
            + beta[None, :, None])


def ref_basic_block(x_ncl, p):
    stride = p["stride"]
    out = _ref_conv1d(x_ncl, p["conv1_w"], p["conv1_b"], stride,
                      p["conv1_w"].shape[2] // 2)
    out = _ref_bn_train(out, p["bn1_g"], p["bn1_b"])
    out = jnp.where(out > 0, out, NEG_SLOPE * out)
    out = _ref_conv1d(out, p["conv2_w"], p["conv2_b"], 1,
                      p["conv2_w"].shape[2] // 2)
    out = _ref_bn_train(out, p["bn2_g"], p["bn2_b"])
    if "ds_w" in p:
        res = _ref_conv1d(x_ncl, p["ds_w"],
                          jnp.zeros((p["ds_w"].shape[0],), jnp.float32), stride, 0)
        res = _ref_bn_train(res, p["ds_bn_g"], p["ds_bn_b"])
    else:
        res = x_ncl
    out = out + res
    return jnp.where(out > 0, out, NEG_SLOPE * out)


# ----------------------------------------------------------------------------
if __name__ == "__main__":
    key = jax.random.PRNGKey(0)
    kx, kp1, kp2 = jax.random.split(key, 3)

    B, L = 2, 32

    # Config 1: stride-2 block with a (Conv1d 1x1 + BN) downsample branch.
    inplanes, planes, stride = 32, 64, 2
    x = jax.random.normal(kx, (B, inplanes, L), jnp.float32)      # NCL, like PyTorch
    p1 = make_block_params(kp1, inplanes, planes, stride)
    y1 = jax.block_until_ready(basic_block_ncl(x, p1))
    assert y1.shape == (B, planes, L // stride), y1.shape
    assert bool(jnp.all(jnp.isfinite(y1)))
    err1 = float(jnp.max(jnp.abs(y1 - ref_basic_block(x, p1))))
    assert err1 < 0.15, err1   # bf16-MXU kernel vs f32 reference

    # Config 2: stride-1 identity-residual block (no downsample).
    p2 = make_block_params(kp2, planes, planes, 1)
    y2 = jax.block_until_ready(basic_block_ncl(y1, p2))
    assert y2.shape == y1.shape, y2.shape
    assert bool(jnp.all(jnp.isfinite(y2)))
    err2 = float(jnp.max(jnp.abs(y2 - ref_basic_block(y1, p2))))
    assert err2 < 0.15, err2

    print("KERNEL_OK")
</pallas_src>

<mosaic_0001>
module attributes {stable_mosaic.version = 11 : i64} {
  func.func @kernel(%arg0: i32, %arg1: memref<64x32xf32, #tpu.memory_space<vmem>>, %arg2: memref<96x64xbf16, #tpu.memory_space<vmem>>, %arg3: memref<192x64xbf16, #tpu.memory_space<vmem>>, %arg4: memref<4x64xf32, #tpu.memory_space<vmem>>, %arg5: memref<32x64xbf16, #tpu.memory_space<vmem>>, %arg6: memref<2x64xf32, #tpu.memory_space<vmem>>, %arg7: memref<32x64xf32, #tpu.memory_space<vmem>>, %arg8: memref<32x96xf32, #tpu.memory_space<vmem>>, %arg9: memref<32x192xf32, #tpu.memory_space<vmem>>) attributes {dimension_semantics = [#tpu.dimension_semantics<arbitrary>], iteration_bounds = array<i64: 1>, scalar_prefetch = 0 : i64, scratch_operands = 2 : i64, tpu.core_type = #tpu.core_type<tc>, window_params = [{pipeline_mode = #tpu.pipeline_mode<synchronous>, transform_indices = @transform_0, window_bounds = array<i64: 64, 32>}, {pipeline_mode = #tpu.pipeline_mode<synchronous>, transform_indices = @transform_1, window_bounds = array<i64: 96, 64>}, {pipeline_mode = #tpu.pipeline_mode<synchronous>, transform_indices = @transform_2, window_bounds = array<i64: 192, 64>}, {pipeline_mode = #tpu.pipeline_mode<synchronous>, transform_indices = @transform_3, window_bounds = array<i64: 4, 64>}, {pipeline_mode = #tpu.pipeline_mode<synchronous>, transform_indices = @transform_4, window_bounds = array<i64: 32, 64>}, {pipeline_mode = #tpu.pipeline_mode<synchronous>, transform_indices = @transform_5, window_bounds = array<i64: 2, 64>}, {pipeline_mode = #tpu.pipeline_mode<synchronous>, transform_indices = @transform_6, window_bounds = array<i64: 32, 64>}]} {
    %cst = arith.constant 0.000000e+00 : f32
    %0 = vector.broadcast %cst : f32 to vector<1x32xf32>
    %c0 = arith.constant 0 : index
    %c0_0 = arith.constant 0 : index
    %1 = vector.load %arg8[%c0, %c0_0] : memref<32x96xf32, #tpu.memory_space<vmem>>, vector<1x32xf32>
    tpu.vector_store %arg8[%c0, %c0_0], %0 {strides = array<i32>} : memref<32x96xf32, #tpu.memory_space<vmem>>, vector<1x32xf32>,
    %c1 = arith.constant 1 : index
    %c0_1 = arith.constant 0 : index
    %2 = tpu.strided_load %arg1[%c1, %c0_1] {strides = array<i32: 2, 1>} : memref<64x32xf32, #tpu.memory_space<vmem>>, vector<15x32xf32>
    %c1_2 = arith.constant 1 : index
    %c0_3 = arith.constant 0 : index
    %3 = vector.load %arg8[%c1_2, %c0_3] : memref<32x96xf32, #tpu.memory_space<vmem>>, vector<15x32xf32>
    tpu.vector_store %arg8[%c1_2, %c0_3], %2 {strides = array<i32>} : memref<32x96xf32, #tpu.memory_space<vmem>>, vector<15x32xf32>,
    %c0_4 = arith.constant 0 : index
    %c0_5 = arith.constant 0 : index
    %4 = tpu.strided_load %arg1[%c0_4, %c0_5] {strides = array<i32: 2, 1>} : memref<64x32xf32, #tpu.memory_space<vmem>>, vector<16x32xf32>
    %c0_6 = arith.constant 0 : index
    %c32 = arith.constant 32 : index
    %5 = vector.load %arg8[%c0_6, %c32] : memref<32x96xf32, #tpu.memory_space<vmem>>, vector<16x32xf32>
    tpu.vector_store %arg8[%c0_6, %c32], %4 {strides = array<i32>} : memref<32x96xf32, #tpu.memory_space<vmem>>, vector<16x32xf32>,
    %c1_7 = arith.constant 1 : index
    %c0_8 = arith.constant 0 : index
    %6 = tpu.strided_load %arg1[%c1_7, %c0_8] {strides = array<i32: 2, 1>} : memref<64x32xf32, #tpu.memory_space<vmem>>, vector<16x32xf32>
    %c0_9 = arith.constant 0 : index
    %c64 = arith.constant 64 : index
    %7 = vector.load %arg8[%c0_9, %c64] : memref<32x96xf32, #tpu.memory_space<vmem>>, vector<16x32xf32>
    tpu.vector_store %arg8[%c0_9, %c64], %6 {strides = array<i32>} : memref<32x96xf32, #tpu.memory_space<vmem>>, vector<16x32xf32>,
    %cst_10 = arith.constant 0.000000e+00 : f32
    %8 = vector.broadcast %cst_10 : f32 to vector<1x32xf32>
    %c16 = arith.constant 16 : index
    %c0_11 = arith.constant 0 : index
    %9 = vector.load %arg8[%c16, %c0_11] : memref<32x96xf32, #tpu.memory_space<vmem>>, vector<1x32xf32>
    tpu.vector_store %arg8[%c16, %c0_11], %8 {strides = array<i32>} : memref<32x96xf32, #tpu.memory_space<vmem>>, vector<1x32xf32>,
    %c33 = arith.constant 33 : index
    %c0_12 = arith.constant 0 : index
    %10 = tpu.strided_load %arg1[%c33, %c0_12] {strides = array<i32: 2, 1>} : memref<64x32xf32, #tpu.memory_space<vmem>>, vector<15x32xf32>
    %c17 = arith.constant 17 : index
    %c0_13 = arith.constant 0 : index
    %11 = vector.load %arg8[%c17, %c0_13] : memref<32x96xf32, #tpu.memory_space<vmem>>, vector<15x32xf32>
    tpu.vector_store %arg8[%c17, %c0_13], %10 {strides = array<i32>} : memref<32x96xf32, #tpu.memory_space<vmem>>, vector<15x32xf32>,
    %c32_14 = arith.constant 32 : index
    %c0_15 = arith.constant 0 : index
    %12 = tpu.strided_load %arg1[%c32_14, %c0_15] {strides = array<i32: 2, 1>} : memref<64x32xf32, #tpu.memory_space<vmem>>, vector<16x32xf32>
    %c16_16 = arith.constant 16 : index
    %c32_17 = arith.constant 32 : index
    %13 = vector.load %arg8[%c16_16, %c32_17] : memref<32x96xf32, #tpu.memory_space<vmem>>, vector<16x32xf32>
    tpu.vector_store %arg8[%c16_16, %c32_17], %12 {strides = array<i32>} : memref<32x96xf32, #tpu.memory_space<vmem>>, vector<16x32xf32>,
    %c33_18 = arith.constant 33 : index
    %c0_19 = arith.constant 0 : index
    %14 = tpu.strided_load %arg1[%c33_18, %c0_19] {strides = array<i32: 2, 1>} : memref<64x32xf32, #tpu.memory_space<vmem>>, vector<16x32xf32>
    %c16_20 = arith.constant 16 : index
    %c64_21 = arith.constant 64 : index
    %15 = vector.load %arg8[%c16_20, %c64_21] : memref<32x96xf32, #tpu.memory_space<vmem>>, vector<16x32xf32>
    tpu.vector_store %arg8[%c16_20, %c64_21], %14 {strides = array<i32>} : memref<32x96xf32, #tpu.memory_space<vmem>>, vector<16x32xf32>,
    %c0_22 = arith.constant 0 : index
    %c0_23 = arith.constant 0 : index
    %16 = vector.load %arg8[%c0_22, %c0_23] : memref<32x96xf32, #tpu.memory_space<vmem>>, vector<32x96xf32>
    %17 = arith.truncf %16 : vector<32x96xf32> to vector<32x96xbf16>
    %c0_24 = arith.constant 0 : index
    %c0_25 = arith.constant 0 : index
    %18 = vector.load %arg2[%c0_24, %c0_25] : memref<96x64xbf16, #tpu.memory_space<vmem>>, vector<96x64xbf16>
    %cst_26 = arith.constant dense<0.000000e+00> : vector<32x64xf32>
    %19 = tpu.matmul %17, %18, %cst_26 {dimension_numbers = #tpu.dot_dimension_numbers<[1], [0], [0], [1], [0, 0, 1, 1], [], []>} : vector<32x96xbf16>, vector<96x64xbf16>, vector<32x64xf32> -> vector<32x64xf32>
    %c0_27 = arith.constant 0 : index
    %c0_28 = arith.constant 0 : index
    %20 = vector.load %arg4[%c0_27, %c0_28] : memref<4x64xf32, #tpu.memory_space<vmem>>, vector<1x64xf32>
    %c1_29 = arith.constant 1 : index
    %c0_30 = arith.constant 0 : index
    %21 = vector.load %arg4[%c1_29, %c0_30] : memref<4x64xf32, #tpu.memory_space<vmem>>, vector<1x64xf32>
    %cst_31 = arith.constant dense<0.000000e+00> : vector<64xf32>
    %22 = vector.multi_reduction <add>, %19, %cst_31 [0] : vector<32x64xf32> to vector<64xf32>
    %23 = vector.shape_cast %22 : vector<64xf32> to vector<1x64xf32>
    %cst_32 = arith.constant 3.200000e+01 : f32
    %24 = vector.broadcast %cst_32 : f32 to vector<1x64xf32>
    %25 = arith.divf %23, %24 : vector<1x64xf32>
    %26 = vector.broadcast %25 : vector<1x64xf32> to vector<32x64xf32>
    %27 = arith.subf %19, %26 : vector<32x64xf32>
    %28 = arith.mulf %27, %27 : vector<32x64xf32>
    %cst_33 = arith.constant dense<0.000000e+00> : vector<64xf32>
    %29 = vector.multi_reduction <add>, %28, %cst_33 [0] : vector<32x64xf32> to vector<64xf32>
    %30 = vector.shape_cast %29 : vector<64xf32> to vector<1x64xf32>
    %cst_34 = arith.constant 3.200000e+01 : f32
    %31 = vector.broadcast %cst_34 : f32 to vector<1x64xf32>
    %32 = arith.divf %30, %31 : vector<1x64xf32>
    %33 = vector.broadcast %25 : vector<1x64xf32> to vector<32x64xf32>
    %34 = arith.subf %19, %33 : vector<32x64xf32>
    %cst_35 = arith.constant 9.99999974E-6 : f32
    %35 = vector.broadcast %cst_35 : f32 to vector<1x64xf32>
    %36 = arith.addf %32, %35 : vector<1x64xf32>
    %37 = math.rsqrt %36 : vector<1x64xf32>
    %38 = arith.mulf %20, %37 : vector<1x64xf32>
    %39 = vector.broadcast %38 : vector<1x64xf32> to vector<32x64xf32>
    %40 = arith.mulf %34, %39 : vector<32x64xf32>
    %41 = vector.broadcast %21 : vector<1x64xf32> to vector<32x64xf32>
    %42 = arith.addf %40, %41 : vector<32x64xf32>
    %cst_36 = arith.constant 0.000000e+00 : f32
    %43 = vector.broadcast %cst_36 : f32 to vector<32x64xf32>
    %44 = arith.cmpf ogt, %42, %43 : vector<32x64xf32>
    %cst_37 = arith.constant 0.00999999977 : f32
    %45 = vector.broadcast %cst_37 : f32 to vector<32x64xf32>
    %46 = arith.mulf %45, %42 : vector<32x64xf32>
    %47 = arith.select %44, %42, %46 : vector<32x64xi1>, vector<32x64xf32>
    %cst_38 = arith.constant 0.000000e+00 : f32
    %48 = vector.broadcast %cst_38 : f32 to vector<1x64xf32>
    %c0_39 = arith.constant 0 : index
    %c0_40 = arith.constant 0 : index
    %49 = vector.load %arg9[%c0_39, %c0_40] : memref<32x192xf32, #tpu.memory_space<vmem>>, vector<1x64xf32>
    tpu.vector_store %arg9[%c0_39, %c0_40], %48 {strides = array<i32>} : memref<32x192xf32, #tpu.memory_space<vmem>>, vector<1x64xf32>,
    %50 = vector.extract_strided_slice %47 {offsets = [0, 0], sizes = [15, 64], strides = [1, 1]} : vector<32x64xf32> to vector<15x64xf32>
    %c1_41 = arith.constant 1 : index
    %c0_42 = arith.constant 0 : index
    %51 = vector.load %arg9[%c1_41, %c0_42] : memref<32x192xf32, #tpu.memory_space<vmem>>, vector<15x64xf32>
    tpu.vector_store %arg9[%c1_41, %c0_42], %50 {strides = array<i32>} : memref<32x192xf32, #tpu.memory_space<vmem>>, vector<15x64xf32>,
    %52 = vector.extract_strided_slice %47 {offsets = [0, 0], sizes = [16, 64], strides = [1, 1]} : vector<32x64xf32> to vector<16x64xf32>
    %c0_43 = arith.constant 0 : index
    %c64_44 = arith.constant 64 : index
    %53 = vector.load %arg9[%c0_43, %c64_44] : memref<32x192xf32, #tpu.memory_space<vmem>>, vector<16x64xf32>
    tpu.vector_store %arg9[%c0_43, %c64_44], %52 {strides = array<i32>} : memref<32x192xf32, #tpu.memory_space<vmem>>, vector<16x64xf32>,
    %cst_45 = arith.constant 0.000000e+00 : f32
    %54 = vector.broadcast %cst_45 : f32 to vector<1x64xf32>
    %c15 = arith.constant 15 : index
    %c128 = arith.constant 128 : index
    %55 = vector.load %arg9[%c15, %c128] : memref<32x192xf32, #tpu.memory_space<vmem>>, vector<1x64xf32>
    tpu.vector_store %arg9[%c15, %c128], %54 {strides = array<i32>} : memref<32x192xf32, #tpu.memory_space<vmem>>, vector<1x64xf32>,
    %56 = vector.extract_strided_slice %47 {offsets = [1, 0], sizes = [15, 64], strides = [1, 1]} : vector<32x64xf32> to vector<15x64xf32>
    %c0_46 = arith.constant 0 : index
    %c128_47 = arith.constant 128 : index
    %57 = vector.load %arg9[%c0_46, %c128_47] : memref<32x192xf32, #tpu.memory_space<vmem>>, vector<15x64xf32>
    tpu.vector_store %arg9[%c0_46, %c128_47], %56 {strides = array<i32>} : memref<32x192xf32, #tpu.memory_space<vmem>>, vector<15x64xf32>,
    %cst_48 = arith.constant 0.000000e+00 : f32
    %58 = vector.broadcast %cst_48 : f32 to vector<1x64xf32>
    %c16_49 = arith.constant 16 : index
    %c0_50 = arith.constant 0 : index
    %59 = vector.load %arg9[%c16_49, %c0_50] : memref<32x192xf32, #tpu.memory_space<vmem>>, vector<1x64xf32>
    tpu.vector_store %arg9[%c16_49, %c0_50], %58 {strides = array<i32>} : memref<32x192xf32, #tpu.memory_space<vmem>>, vector<1x64xf32>,
    %60 = vector.extract_strided_slice %47 {offsets = [16, 0], sizes = [15, 64], strides = [1, 1]} : vector<32x64xf32> to vector<15x64xf32>
    %c17_51 = arith.constant 17 : index
    %c0_52 = arith.constant 0 : index
    %61 = vector.load %arg9[%c17_51, %c0_52] : memref<32x192xf32, #tpu.memory_space<vmem>>, vector<15x64xf32>
    tpu.vector_store %arg9[%c17_51, %c0_52], %60 {strides = array<i32>} : memref<32x192xf32, #tpu.memory_space<vmem>>, vector<15x64xf32>,
    %62 = vector.extract_strided_slice %47 {offsets = [16, 0], sizes = [16, 64], strides = [1, 1]} : vector<32x64xf32> to vector<16x64xf32>
    %c16_53 = arith.constant 16 : index
    %c64_54 = arith.constant 64 : index
    %63 = vector.load %arg9[%c16_53, %c64_54] : memref<32x192xf32, #tpu.memory_space<vmem>>, vector<16x64xf32>
    tpu.vector_store %arg9[%c16_53, %c64_54], %62 {strides = array<i32>} : memref<32x192xf32, #tpu.memory_space<vmem>>, vector<16x64xf32>,
    %cst_55 = arith.constant 0.000000e+00 : f32
    %64 = vector.broadcast %cst_55 : f32 to vector<1x64xf32>
    %c31 = arith.constant 31 : index
    %c128_56 = arith.constant 128 : index
    %65 = vector.load %arg9[%c31, %c128_56] : memref<32x192xf32, #tpu.memory_space<vmem>>, vector<1x64xf32>
    tpu.vector_store %arg9[%c31, %c128_56], %64 {strides = array<i32>} : memref<32x192xf32, #tpu.memory_space<vmem>>, vector<1x64xf32>,
    %66 = vector.extract_strided_slice %47 {offsets = [17, 0], sizes = [15, 64], strides = [1, 1]} : vector<32x64xf32> to vector<15x64xf32>
    %c16_57 = arith.constant 16 : index
    %c128_58 = arith.constant 128 : index
    %67 = vector.load %arg9[%c16_57, %c128_58] : memref<32x192xf32, #tpu.memory_space<vmem>>, vector<15x64xf32>
    tpu.vector_store %arg9[%c16_57, %c128_58], %66 {strides = array<i32>} : memref<32x192xf32, #tpu.memory_space<vmem>>, vector<15x64xf32>,
    %c0_59 = arith.constant 0 : index
    %c0_60 = arith.constant 0 : index
    %68 = vector.load %arg9[%c0_59, %c0_60] : memref<32x192xf32, #tpu.memory_space<vmem>>, vector<32x192xf32>
    %69 = arith.truncf %68 : vector<32x192xf32> to vector<32x192xbf16>
    %c0_61 = arith.constant 0 : index
    %c0_62 = arith.constant 0 : index
    %70 = vector.load %arg3[%c0_61, %c0_62] : memref<192x64xbf16, #tpu.memory_space<vmem>>, vector<192x64xbf16>
    %cst_63 = arith.constant dense<0.000000e+00> : vector<32x64xf32>
    %71 = tpu.matmul %69, %70, %cst_63 {dimension_numbers = #tpu.dot_dimension_numbers<[1], [0], [0], [1], [0, 0, 1, 1], [], []>} : vector<32x192xbf16>, vector<192x64xbf16>, vector<32x64xf32> -> vector<32x64xf32>
    %c2 = arith.constant 2 : index
    %c0_64 = arith.constant 0 : index
    %72 = vector.load %arg4[%c2, %c0_64] : memref<4x64xf32, #tpu.memory_space<vmem>>, vector<1x64xf32>
    %c3 = arith.constant 3 : index
    %c0_65 = arith.constant 0 : index
    %73 = vector.load %arg4[%c3, %c0_65] : memref<4x64xf32, #tpu.memory_space<vmem>>, vector<1x64xf32>
    %cst_66 = arith.constant dense<0.000000e+00> : vector<64xf32>
    %74 = vector.multi_reduction <add>, %71, %cst_66 [0] : vector<32x64xf32> to vector<64xf32>
    %75 = vector.shape_cast %74 : vector<64xf32> to vector<1x64xf32>
    %cst_67 = arith.constant 3.200000e+01 : f32
    %76 = vector.broadcast %cst_67 : f32 to vector<1x64xf32>
    %77 = arith.divf %75, %76 : vector<1x64xf32>
    %78 = vector.broadcast %77 : vector<1x64xf32> to vector<32x64xf32>
    %79 = arith.subf %71, %78 : vector<32x64xf32>
    %80 = arith.mulf %79, %79 : vector<32x64xf32>
    %cst_68 = arith.constant dense<0.000000e+00> : vector<64xf32>
    %81 = vector.multi_reduction <add>, %80, %cst_68 [0] : vector<32x64xf32> to vector<64xf32>
    %82 = vector.shape_cast %81 : vector<64xf32> to vector<1x64xf32>
    %cst_69 = arith.constant 3.200000e+01 : f32
    %83 = vector.broadcast %cst_69 : f32 to vector<1x64xf32>
    %84 = arith.divf %82, %83 : vector<1x64xf32>
    %85 = vector.broadcast %77 : vector<1x64xf32> to vector<32x64xf32>
    %86 = arith.subf %71, %85 : vector<32x64xf32>
    %cst_70 = arith.constant 9.99999974E-6 : f32
    %87 = vector.broadcast %cst_70 : f32 to vector<1x64xf32>
    %88 = arith.addf %84, %87 : vector<1x64xf32>
    %89 = math.rsqrt %88 : vector<1x64xf32>
    %90 = arith.mulf %72, %89 : vector<1x64xf32>
    %91 = vector.broadcast %90 : vector<1x64xf32> to vector<32x64xf32>
    %92 = arith.mulf %86, %91 : vector<32x64xf32>
    %93 = vector.broadcast %73 : vector<1x64xf32> to vector<32x64xf32>
    %94 = arith.addf %92, %93 : vector<32x64xf32>
    %c0_71 = arith.constant 0 : index
    %c32_72 = arith.constant 32 : index
    %95 = vector.load %arg8[%c0_71, %c32_72] : memref<32x96xf32, #tpu.memory_space<vmem>>, vector<32x32xf32>
    %96 = arith.truncf %95 : vector<32x32xf32> to vector<32x32xbf16>
    %c0_73 = arith.constant 0 : index
    %c0_74 = arith.constant 0 : index
    %97 = vector.load %arg5[%c0_73, %c0_74] : memref<32x64xbf16, #tpu.memory_space<vmem>>, vector<32x64xbf16>
    %cst_75 = arith.constant dense<0.000000e+00> : vector<32x64xf32>
    %98 = tpu.matmul %96, %97, %cst_75 {dimension_numbers = #tpu.dot_dimension_numbers<[1], [0], [0], [1], [0, 0, 1, 1], [], []>} : vector<32x32xbf16>, vector<32x64xbf16>, vector<32x64xf32> -> vector<32x64xf32>
    %c0_76 = arith.constant 0 : index
    %c0_77 = arith.constant 0 : index
    %99 = vector.load %arg6[%c0_76, %c0_77] : memref<2x64xf32, #tpu.memory_space<vmem>>, vector<1x64xf32>
    %c1_78 = arith.constant 1 : index
    %c0_79 = arith.constant 0 : index
    %100 = vector.load %arg6[%c1_78, %c0_79] : memref<2x64xf32, #tpu.memory_space<vmem>>, vector<1x64xf32>
    %cst_80 = arith.constant dense<0.000000e+00> : vector<64xf32>
    %101 = vector.multi_reduction <add>, %98, %cst_80 [0] : vector<32x64xf32> to vector<64xf32>
    %102 = vector.shape_cast %101 : vector<64xf32> to vector<1x64xf32>
    %cst_81 = arith.constant 3.200000e+01 : f32
    %103 = vector.broadcast %cst_81 : f32 to vector<1x64xf32>
    %104 = arith.divf %102, %103 : vector<1x64xf32>
    %105 = vector.broadcast %104 : vector<1x64xf32> to vector<32x64xf32>
    %106 = arith.subf %98, %105 : vector<32x64xf32>
    %107 = arith.mulf %106, %106 : vector<32x64xf32>
    %cst_82 = arith.constant dense<0.000000e+00> : vector<64xf32>
    %108 = vector.multi_reduction <add>, %107, %cst_82 [0] : vector<32x64xf32> to vector<64xf32>
    %109 = vector.shape_cast %108 : vector<64xf32> to vector<1x64xf32>
    %cst_83 = arith.constant 3.200000e+01 : f32
    %110 = vector.broadcast %cst_83 : f32 to vector<1x64xf32>
    %111 = arith.divf %109, %110 : vector<1x64xf32>
    %112 = vector.broadcast %104 : vector<1x64xf32> to vector<32x64xf32>
    %113 = arith.subf %98, %112 : vector<32x64xf32>
    %cst_84 = arith.constant 9.99999974E-6 : f32
    %114 = vector.broadcast %cst_84 : f32 to vector<1x64xf32>
    %115 = arith.addf %111, %114 : vector<1x64xf32>
    %116 = math.rsqrt %115 : vector<1x64xf32>
    %117 = arith.mulf %99, %116 : vector<1x64xf32>
    %118 = vector.broadcast %117 : vector<1x64xf32> to vector<32x64xf32>
    %119 = arith.mulf %113, %118 : vector<32x64xf32>
    %120 = vector.broadcast %100 : vector<1x64xf32> to vector<32x64xf32>
    %121 = arith.addf %119, %120 : vector<32x64xf32>
    %122 = arith.addf %94, %121 : vector<32x64xf32>
    %cst_85 = arith.constant 0.000000e+00 : f32
    %123 = vector.broadcast %cst_85 : f32 to vector<32x64xf32>
    %124 = arith.cmpf ogt, %122, %123 : vector<32x64xf32>
    %cst_86 = arith.constant 0.00999999977 : f32
    %125 = vector.broadcast %cst_86 : f32 to vector<32x64xf32>
    %126 = arith.mulf %125, %122 : vector<32x64xf32>
    %127 = arith.select %124, %122, %126 : vector<32x64xi1>, vector<32x64xf32>
    %c0_87 = arith.constant 0 : index
    %c0_88 = arith.constant 0 : index
    %128 = vector.load %arg7[%c0_87, %c0_88] : memref<32x64xf32, #tpu.memory_space<vmem>>, vector<32x64xf32>
    tpu.vector_store %arg7[%c0_87, %c0_88], %127 {strides = array<i32>} : memref<32x64xf32, #tpu.memory_space<vmem>>, vector<32x64xf32>,
    return
  }
  func.func @transform_0(%arg0: i32) -> (i32, i32) {
    %c0_i32 = arith.constant 0 : i32
    %c0_i32_0 = arith.constant 0 : i32
    %c0_i32_1 = arith.constant 0 : i32
    return %c0_i32, %c0_i32_0 : i32, i32
  }
  func.func @transform_1(%arg0: i32) -> (i32, i32) {
    %c0_i32 = arith.constant 0 : i32
    %c0_i32_0 = arith.constant 0 : i32
    %c0_i32_1 = arith.constant 0 : i32
    return %c0_i32, %c0_i32_0 : i32, i32
  }
  func.func @transform_2(%arg0: i32) -> (i32, i32) {
    %c0_i32 = arith.constant 0 : i32
    %c0_i32_0 = arith.constant 0 : i32
    %c0_i32_1 = arith.constant 0 : i32
    return %c0_i32, %c0_i32_0 : i32, i32
  }
  func.func @transform_3(%arg0: i32) -> (i32, i32) {
    %c0_i32 = arith.constant 0 : i32
    %c0_i32_0 = arith.constant 0 : i32
    %c0_i32_1 = arith.constant 0 : i32
    return %c0_i32, %c0_i32_0 : i32, i32
  }
  func.func @transform_4(%arg0: i32) -> (i32, i32) {
    %c0_i32 = arith.constant 0 : i32
    %c0_i32_0 = arith.constant 0 : i32
    %c0_i32_1 = arith.constant 0 : i32
    return %c0_i32, %c0_i32_0 : i32, i32
  }
  func.func @transform_5(%arg0: i32) -> (i32, i32) {
    %c0_i32 = arith.constant 0 : i32
    %c0_i32_0 = arith.constant 0 : i32
    %c0_i32_1 = arith.constant 0 : i32
    return %c0_i32, %c0_i32_0 : i32, i32
  }
  func.func @transform_6(%arg0: i32) -> (i32, i32) {
    %c0_i32 = arith.constant 0 : i32
    %c0_i32_0 = arith.constant 0 : i32
    %c0_i32_1 = arith.constant 0 : i32
    return %c0_i32, %c0_i32_0 : i32, i32
  }
}

</mosaic_0001>

<llo_original>
// kernel: tpu_custom_call.1
$region0: #{tpu_custom_call.1}
  #allocation0 [shape = 'u32[]', space=smem, size = 0x4, offset = 0x4, fixed_abs, tag = 'smem constant byte address 0x4 - core index']
  #allocation1 [shape = 'u32[144,128]{1,0:T(1,128)}', space=vmem, size = 0x12000, scoped, tag = 'internal scratch']
  #allocation2 [shape = 'f32[32,96]{1,0:T(8,128)}', space=vmem, size = 0x4000, scoped, tag = 'scratch operand']
  #allocation3 [shape = 'f32[32,192]{1,0:T(8,128)}', space=vmem, size = 0x8000, scoped, tag = 'scratch operand']
  %s0 = inlined_call_operand.vmem [shape: f32[64,32], index: 0, kind: input, shape index: {}]
  %s1 = inlined_call_operand.vmem [shape: bf16[96,64], index: 1, kind: input, shape index: {}]
  %s2 = inlined_call_operand.vmem [shape: bf16[192,64], index: 2, kind: input, shape index: {}]
  %s3 = inlined_call_operand.vmem [shape: f32[4,64], index: 3, kind: input, shape index: {}]
  %s4 = inlined_call_operand.vmem [shape: bf16[32,64], index: 4, kind: input, shape index: {}]
  %s5 = inlined_call_operand.vmem [shape: f32[2,64], index: 5, kind: input, shape index: {}]
  %s6 = inlined_call_operand.hbm [shape: f32[32,64], index: 6, kind: output, shape index: {}]
  %s7 = sld [smem:[#allocation0]]
  $region34: #{tpu_custom_call.1} parent=0
    _
  %s9 = ssub.s32 1, %s7
  %s10 = scalar_select 0, %s9, %s7
  $region1: #{tpu_custom_call.1} parent=0
    #allocation4 [shape = 'u8[16384]{0}', space=vmem, size = 0x4000, scoped, tag = 'output window, operand 0, single buffered']
    #allocation5 [shape = 's32[1]{0}', space=sflag, size = 0x4, scoped, tag = 'scoped memory for tpu_custom_call.1']
    %11 = vsyncpa [#allocation5], 0
    // Predicated region
    $region2: #{tpu_custom_call.1} parent=1 // pred_check
      _
    $region3: #{tpu_custom_call.1} parent=1 // pred_check_branch
      %13 = sbr.rel (0) target = $region5
    $region4: #{tpu_custom_call.1} parent=1 // pred_region
      _
    $region5: #{tpu_custom_call.1} parent=1 // pred_fallthru
      _
    // Predicated region
    $region6: #{tpu_custom_call.1} parent=1 // pred_check
      _
    $region7: #{tpu_custom_call.1} parent=1 // pred_check_branch
      %15 = sbr.rel (0) target = $region9
    $region8: #{tpu_custom_call.1} parent=1 // pred_region
      _
    $region9: #{tpu_custom_call.1} parent=1 // pred_fallthru
      _
    // Predicated region
    $region10: #{tpu_custom_call.1} parent=1 // pred_check
      _
    $region11: #{tpu_custom_call.1} parent=1 // pred_check_branch
      %17 = sbr.rel (0) target = $region13
    $region12: #{tpu_custom_call.1} parent=1 // pred_region
      _
    $region13: #{tpu_custom_call.1} parent=1 // pred_fallthru
      _
    // Predicated region
    $region14: #{tpu_custom_call.1} parent=1 // pred_check
      _
    $region15: #{tpu_custom_call.1} parent=1 // pred_check_branch
      %19 = sbr.rel (0) target = $region17
    $region16: #{tpu_custom_call.1} parent=1 // pred_region
      _
    $region17: #{tpu_custom_call.1} parent=1 // pred_fallthru
      _
    // Predicated region
    $region18: #{tpu_custom_call.1} parent=1 // pred_check
      _
    $region19: #{tpu_custom_call.1} parent=1 // pred_check_branch
      %21 = sbr.rel (0) target = $region21
    $region20: #{tpu_custom_call.1} parent=1 // pred_region
      _
    $region21: #{tpu_custom_call.1} parent=1 // pred_fallthru
      _
    // Predicated region
    $region22: #{tpu_custom_call.1} parent=1 // pred_check
      _
    $region23: #{tpu_custom_call.1} parent=1 // pred_check_branch
      %23 = sbr.rel (0) target = $region25
    $region24: #{tpu_custom_call.1} parent=1 // pred_region
      _
    $region25: #{tpu_custom_call.1} parent=1 // pred_fallthru
      _
    %vm25 = vcmask 253952
    %26 = vst.msk [vmem:[#allocation2] sm:$0x1] %vm25, 0.0
    %s27 = scalar_lea.vmem %s0, 1
    %v28 = vld [vmem:[%s27] ss:$2 sm:$0xff]
    %s29 = scalar_lea.vmem %s0, 17
    %v30 = vld [vmem:[%s29] ss:$2 sm:$0x7f]
    %vm31 = vcmask 261120
    %32 = vst.msk [vmem:[#allocation2 + $0x1] sm:$0xff] %vm31, %v28
    %vm33 = vcmask 260096
    %34 = vst.msk [vmem:[#allocation2 + $0x9] sm:$0x7f] %vm33, %v30
    %v35 = vld [vmem:[%s0] ss:$2 sm:$0xff]
    %s36 = scalar_lea.vmem %s0, 16
    %v37 = vld [vmem:[%s36] ss:$2 sm:$0xff]
    %40 = vrot.lane.b32.xlu0 %v35, 32
    %v41 = vpop.permute.xlu0 %40
    %42 = vrot.lane.b32.xlu0 %v37, 32
    %v43 = vpop.permute.xlu0 %42
    %vm46 = vcmask 523520
    %47 = vst.msk [vmem:[#allocation2] sm:$0xff] %vm46, %v41
    %48 = vst.msk [vmem:[#allocation2 + $0x8] sm:$0xff] %vm46, %v43
    %v49 = vld [vmem:[%s27] ss:$2 sm:$0xff]
    %v50 = vld [vmem:[%s29] ss:$2 sm:$0xff]
    %53 = vrot.lane.b32.xlu0 %v49, 64
    %v54 = vpop.permute.xlu0 %53
    %55 = vrot.lane.b32.xlu0 %v50, 64
    %v56 = vpop.permute.xlu0 %55
    %vm59 = vcmask 785920
    %60 = vst.msk [vmem:[#allocation2] sm:$0xff] %vm59, %v54
    %61 = vst.msk [vmem:[#allocation2 + $0x8] sm:$0xff] %vm59, %v56
    %62 = vst.msk [vmem:[#allocation2 + $0x10] sm:$0x1] %vm25, 0.0
    %s63 = scalar_lea.vmem %s0, 33
    %v64 = vld [vmem:[%s63] ss:$2 sm:$0xff]
    %s65 = scalar_lea.vmem %s0, 49
    %v66 = vld [vmem:[%s65] ss:$2 sm:$0x7f]
    %67 = vst.msk [vmem:[#allocation2 + $0x11] sm:$0xff] %vm31, %v64
    %68 = vst.msk [vmem:[#allocation2 + $0x19] sm:$0x7f] %vm33, %v66
    %s69 = scalar_lea.vmem %s0, 32
    %v70 = vld [vmem:[%s69] ss:$2 sm:$0xff]
    %s71 = scalar_lea.vmem %s0, 48
    %v72 = vld [vmem:[%s71] ss:$2 sm:$0xff]
    %75 = vrot.lane.b32.xlu0 %v70, 32
    %v76 = vpop.permute.xlu0 %75
    %77 = vrot.lane.b32.xlu0 %v72, 32
    %v78 = vpop.permute.xlu0 %77
    %81 = vst.msk [vmem:[#allocation2 + $0x10] sm:$0xff] %vm46, %v76
    %82 = vst.msk [vmem:[#allocation2 + $0x18] sm:$0xff] %vm46, %v78
    %v83 = vld [vmem:[%s63] ss:$2 sm:$0xff]
    %v84 = vld [vmem:[%s65] ss:$2 sm:$0xff]
    %87 = vrot.lane.b32.xlu0 %v83, 64
    %v88 = vpop.permute.xlu0 %87
    %89 = vrot.lane.b32.xlu0 %v84, 64
    %v90 = vpop.permute.xlu0 %89
    %93 = vst.msk [vmem:[#allocation2 + $0x10] sm:$0xff] %vm59, %v88
    %94 = vst.msk [vmem:[#allocation2 + $0x18] sm:$0xff] %vm59, %v90
    %v95 = vld [vmem:[#allocation2] sm:$0xff]
    %v96 = vld [vmem:[#allocation2 + $0x8] sm:$0xff]
    %v97 = vld [vmem:[#allocation2 + $0x10] sm:$0xff]
    %v98 = vld [vmem:[#allocation2 + $0x18] sm:$0xff]
    %v99 = vpack.c.bf16 %v96, %v95
    %v100 = vpack.c.bf16 %v98, %v97
    %v101 = vld [vmem:[%s1] sm:$0xf]
    %v102 = vld [vmem:[%s1 + $0x4] sm:$0xf]
    %v103 = vld [vmem:[%s1 + $0x8] sm:$0xf]
    %v104 = vld [vmem:[%s1 + $0xc] sm:$0xf]
    %v105 = vld [vmem:[%s1 + $0x10] sm:$0xf]
    %v106 = vld [vmem:[%s1 + $0x14] sm:$0xf]
    %v107 = vld [vmem:[%s1 + $0x18] sm:$0xf]
    %v108 = vld [vmem:[%s1 + $0x1c] sm:$0xf]
    %v109 = vld [vmem:[%s1 + $0x20] sm:$0xf]
    %v110 = vld [vmem:[%s1 + $0x24] sm:$0xf]
    %v111 = vld [vmem:[%s1 + $0x28] sm:$0xf]
    %v112 = vld [vmem:[%s1 + $0x2c] sm:$0xf]
    %v125 = vunpack.c.l.b16 %v101
    %v126 = vunpack.c.l.b16 %v102
    %v127 = vunpack.c.l.b16 %v103
    %v128 = vunpack.c.l.b16 %v104
    %v129 = vunpack.c.l.b16 %v105
    %v130 = vunpack.c.l.b16 %v106
    %v131 = vunpack.c.l.b16 %v107
    %v132 = vunpack.c.l.b16 %v108
    %v133 = vunpack.c.l.b16 %v109
    %v134 = vunpack.c.l.b16 %v110
    %v135 = vunpack.c.l.b16 %v111
    %v136 = vunpack.c.l.b16 %v112
    %v137 = vpack.c.b16 %v126, %v125
    %v138 = vpack.c.b16 %v128, %v127
    %v139 = vpack.c.b16 %v130, %v129
    %v140 = vpack.c.b16 %v132, %v131
    %v141 = vpack.c.b16 %v134, %v133
    %v142 = vpack.c.b16 %v136, %v135
    %vm149 = vcmask 785408
    %v151 = vsel %vm149, %v99, 0
    %v154 = vsel %vm149, %v100, 0
    %156 = vmatprep.subr.bf16.mxu0 0
    %157 = vmatpush1.bf16.msra.mxu0 %v137
    %158 = vmatprep.subr.bf16.mxu0 0
    %159 = vmatpush1.bf16.msra.mxu0 %v138
    %160 = vmatprep.subr.bf16.mxu0 0
    %161 = vmatpush1.bf16.msra.mxu0 %v139
    %162 = vmatprep.subr.bf16.mxu0 0
    %163 = vmatpush1.bf16.msra.mxu0 %v140
    %164 = vmatprep.subr.bf16.mxu0 0
    %165 = vmatpush1.bf16.msra.mxu0 %v141
    %166 = vmatprep.subr.bf16.mxu0 0
    %167 = vmatpush1.bf16.msra.mxu0 %v142
    %168 = vmatprep.subr.bf16.mxu0 0
    %169 = vmatpush1.bf16.msra.mxu0 0
    %170 = vmatprep.subr.bf16.mxu0 0
    %171 = vmatpush1.bf16.msra.mxu0 0
    %172 = vmatprep.subr.bf16.mxu0 0
    %173 = vmatpush1.bf16.msra.mxu0 0
    %174 = vmatprep.subr.bf16.mxu0 0
    %175 = vmatpush1.bf16.msra.mxu0 0
    %176 = vmatprep.subr.bf16.mxu0 0
    %177 = vmatpush1.bf16.msra.mxu0 0
    %178 = vmatprep.subr.bf16.mxu0 0
    %179 = vmatpush1.bf16.msra.mxu0 0
    %180 = vmatprep.subr.bf16.mxu0 0
    %181 = vmatpush1.bf16.msra.mxu0 0
    %182 = vmatprep.subr.bf16.mxu0 0
    %183 = vmatpush1.bf16.msra.mxu0 0
    %184 = vmatprep.subr.bf16.mxu0 0
    %185 = vmatpush1.bf16.msra.mxu0 0
    %186 = vmatprep.subr.bf16.mxu0 0
    %187 = vmatpush1.bf16.msra.mxu0 0
    %188 = vmatprep.mubr.bf16.mxu0 0
    %189 = vmatmul.mubr.bf16.gmra.mrb[0].mxu0 %v151
    %v190 = vpop.f32.mrb[0].mxu0
    %v191 = vadd.f32 0.0, %v190
    %v192 = vpop.f32.mrb[0].mxu0
    %v193 = vpop.f32.mrb[0].mxu0
    %v194 = vadd.f32 0.0, %v193
    %v195 = vpop.f32.mrb[0].mxu0
    %196 = vmatprep.mubr.bf16.mxu0 0
    %197 = vmatmul.mubr.bf16.gmra.mrb[0].mxu0 %v154
    %v198 = vpop.f32.mrb[0].mxu0
    %v199 = vadd.f32 0.0, %v198
    %v200 = vpop.f32.mrb[0].mxu0
    %v201 = vpop.f32.mrb[0].mxu0
    %v202 = vadd.f32 0.0, %v201
    %v203 = vpop.f32.mrb[0].mxu0
    %204 = vdwg.mxu0
    %v205 = vld [vmem:[%s3] sm:$0x1]
    %v206 = vld [vmem:[%s3 + $0x1] sm:$0x1]
    %vm207 = vcmask 523264
    %v208 = vsel %vm207, %v191, 0.0
    %v209 = vsel %vm207, %v194, 0.0
    %v210 = vadd.f32 %v208, %v209
    %v211 = vsel %vm207, %v199, 0.0
    %v212 = vadd.f32 %v210, %v211
    %v213 = vsel %vm207, %v202, 0.0
    %v214 = vadd.f32 %v212, %v213
    %v215 = vrot.slane %v214, 4
    %v216 = vadd.f32 %v214, %v215
    %v217 = vrot.slane %v216, 2
    %v218 = vadd.f32 %v216, %v217
    %v219 = vrot.slane %v218, 1
    %v220 = vadd.f32 %v218, %v219
    %v221 = vrcp.pop 32.0
    %v222 = vmul.f32 %v220, %v221
    %v223 = vsub.f32 %v191, %v222
    %v224 = vsub.f32 %v194, %v222
    %v225 = vsub.f32 %v199, %v222
    %v226 = vsub.f32 %v202, %v222
    %v227 = vmul.f32 %v223, %v223
    %v228 = vmul.f32 %v224, %v224
    %v229 = vmul.f32 %v225, %v225
    %v230 = vmul.f32 %v226, %v226
    %v231 = vsel %vm207, %v227, 0.0
    %v232 = vsel %vm207, %v228, 0.0
    %v233 = vadd.f32 %v231, %v232
    %v234 = vsel %vm207, %v229, 0.0
    %v235 = vadd.f32 %v233, %v234
    %v236 = vsel %vm207, %v230, 0.0
    %v237 = vadd.f32 %v235, %v236
    %v238 = vrot.slane %v237, 4
    %v239 = vadd.f32 %v237, %v238
    %v240 = vrot.slane %v239, 2
    %v241 = vadd.f32 %v239, %v240
    %v242 = vrot.slane %v241, 1
    %v243 = vadd.f32 %v241, %v242
    %v244 = vmul.f32 %v243, %v221
    %v245 = vadd.f32 %v244, 1e-05
    %v246 = vrsqrt.pop %v245
    %v247 = vmul.f32 %v205, %v246
    %v248 = vlaneseq
    %v249 = vshrl.u32 %v248, 7
    %v250 = vsub.s32 0, %v249
    %v251 = vrot.slane %v247, %v250
    %v252 = vmul.f32 %v223, %v251
    %v253 = vmul.f32 %v224, %v251
    %v254 = vmul.f32 %v225, %v251
    %v255 = vmul.f32 %v226, %v251
    %v256 = vlaneseq
    %v257 = vshrl.u32 %v256, 7
    %v258 = vsub.s32 0, %v257
    %v259 = vrot.slane %v206, %v258
    %v260 = vadd.f32 %v252, %v259
    %v261 = vadd.f32 %v253, %v259
    %v262 = vadd.f32 %v254, %v259
    %v263 = vadd.f32 %v255, %v259
    %vm264 = vcmp.gt.f32.partialorder %v260, 0.0
    %vm265 = vcmp.gt.f32.partialorder %v261, 0.0
    %vm266 = vcmp.gt.f32.partialorder %v262, 0.0
    %vm267 = vcmp.gt.f32.partialorder %v263, 0.0
    %v268 = vmul.f32 %v260, 0.01
    %v269 = vmul.f32 %v261, 0.01
    %v270 = vmul.f32 %v262, 0.01
    %v271 = vmul.f32 %v263, 0.01
    %v272 = vsel %vm264, %v260, %v268
    %v273 = vsel %vm265, %v261, %v269
    %v274 = vsel %vm266, %v262, %v270
    %v275 = vsel %vm267, %v263, %v271
    %vm276 = vcmask 516096
    %277 = vst.msk [vmem:[#allocation3] sm:$0x1] %vm276, 0.0
    %vm280 = vcmask 1040384
    %v281 = vrot.slane %v272, 7
    %v282 = vrot.slane %v273, 7
    %v283 = vsel %vm280, %v281, %v282
    %vm286 = vcmask 523265
    %287 = vst.msk [vmem:[#allocation3] sm:$0xfe] %vm286, %v281
    %288 = vst.msk [vmem:[#allocation3 + $0x10] sm:$0xff] %vm207, %v283
    %289 = vrot.lane.b32.xlu0 %v272, 64
    %v290 = vpop.permute.xlu0 %289
    %291 = vrot.lane.b32.xlu0 %v273, 64
    %v292 = vpop.permute.xlu0 %291
    %vm295 = vcmask 1048064
    %296 = vst.msk [vmem:[#allocation3] sm:$0xff] %vm295, %v290
    %297 = vst.msk [vmem:[#allocation3 + $0x10] sm:$0xff] %vm295, %v292
    %298 = vst.msk [vmem:[#allocation3 + $0x1f] sm:$0x1] %vm276, 0.0
    %vm299 = vcmask 1046528
    %v300 = vrot.slane %v272, 1
    %v301 = vrot.slane %v273, 1
    %v302 = vsel %vm299, %v300, %v301
    %305 = vst.msk [vmem:[#allocation3 + $0x8] sm:$0xff] %vm207, %v302
    %vm306 = vcmask 522240
    %307 = vst.msk [vmem:[#allocation3 + $0x18] sm:$0x7f] %vm306, %v301
    %308 = vst.msk [vmem:[#allocation3 + $0x20] sm:$0x1] %vm276, 0.0
    %v311 = vrot.slane %v274, 7
    %v312 = vrot.slane %v275, 7
    %v313 = vsel %vm280, %v311, %v312
    %316 = vst.msk [vmem:[#allocation3 + $0x20] sm:$0xfe] %vm286, %v311
    %317 = vst.msk [vmem:[#allocation3 + $0x30] sm:$0xff] %vm207, %v313
    %318 = vrot.lane.b32.xlu0 %v274, 64
    %v319 = vpop.permute.xlu0 %318
    %320 = vrot.lane.b32.xlu0 %v275, 64
    %v321 = vpop.permute.xlu0 %320
    %324 = vst.msk [vmem:[#allocation3 + $0x20] sm:$0xff] %vm295, %v319
    %325 = vst.msk [vmem:[#allocation3 + $0x30] sm:$0xff] %vm295, %v321
    %326 = vst.msk [vmem:[#allocation3 + $0x3f] sm:$0x1] %vm276, 0.0
    %v327 = vrot.slane %v274, 1
    %v328 = vrot.slane %v275, 1
    %v329 = vsel %vm299, %v327, %v328
    %332 = vst.msk [vmem:[#allocation3 + $0x28] sm:$0xff] %vm207, %v329
    %333 = vst.msk [vmem:[#allocation3 + $0x38] sm:$0x7f] %vm306, %v328
    %v334 = vld [vmem:[#allocation3] sm:$0xff]
    %v335 = vld [vmem:[#allocation3 + $0x8] sm:$0xff]
    %v336 = vld [vmem:[#allocation3 + $0x10] sm:$0xff]
    %v337 = vld [vmem:[#allocation3 + $0x18] sm:$0xff]
    %v338 = vld [vmem:[#allocation3 + $0x20] sm:$0xff]
    %v339 = vld [vmem:[#allocation3 + $0x28] sm:$0xff]
    %v340 = vld [vmem:[#allocation3 + $0x30] sm:$0xff]
    %v341 = vld [vmem:[#allocation3 + $0x38] sm:$0xff]
    %v342 = vpack.c.bf16 %v336, %v334
    %v343 = vpack.c.bf16 %v337, %v335
    %v344 = vpack.c.bf16 %v340, %v338
    %v345 = vpack.c.bf16 %v341, %v339
    %v346 = vld [vmem:[%s2] sm:$0xf]
    %v347 = vld [vmem:[%s2 + $0x4] sm:$0xf]
    %v348 = vld [vmem:[%s2 + $0x8] sm:$0xf]
    %v349 = vld [vmem:[%s2 + $0xc] sm:$0xf]
    %v350 = vld [vmem:[%s2 + $0x10] sm:$0xf]
    %v351 = vld [vmem:[%s2 + $0x14] sm:$0xf]
    %v352 = vld [vmem:[%s2 + $0x18] sm:$0xf]
    %v353 = vld [vmem:[%s2 + $0x1c] sm:$0xf]
    %v354 = vld [vmem:[%s2 + $0x20] sm:$0xf]
    %v355 = vld [vmem:[%s2 + $0x24] sm:$0xf]
    %v356 = vld [vmem:[%s2 + $0x28] sm:$0xf]
    %v357 = vld [vmem:[%s2 + $0x2c] sm:$0xf]
    %v358 = vld [vmem:[%s2 + $0x30] sm:$0xf]
    %v359 = vld [vmem:[%s2 + $0x34] sm:$0xf]
    %v360 = vld [vmem:[%s2 + $0x38] sm:$0xf]
    %v361 = vld [vmem:[%s2 + $0x3c] sm:$0xf]
    %v362 = vld [vmem:[%s2 + $0x40] sm:$0xf]
    %v363 = vld [vmem:[%s2 + $0x44] sm:$0xf]
    %v364 = vld [vmem:[%s2 + $0x48] sm:$0xf]
    %v365 = vld [vmem:[%s2 + $0x4c] sm:$0xf]
    %v366 = vld [vmem:[%s2 + $0x50] sm:$0xf]
    %v367 = vld [vmem:[%s2 + $0x54] sm:$0xf]
    %v368 = vld [vmem:[%s2 + $0x58] sm:$0xf]
    %v369 = vld [vmem:[%s2 + $0x5c] sm:$0xf]
    %v394 = vunpack.c.l.b16 %v346
    %v395 = vunpack.c.l.b16 %v347
    %v396 = vunpack.c.l.b16 %v348
    %v397 = vunpack.c.l.b16 %v349
    %v398 = vunpack.c.l.b16 %v350
    %v399 = vunpack.c.l.b16 %v351
    %v400 = vunpack.c.l.b16 %v352
    %v401 = vunpack.c.l.b16 %v353
    %v402 = vunpack.c.l.b16 %v354
    %v403 = vunpack.c.l.b16 %v355
    %v404 = vunpack.c.l.b16 %v356
    %v405 = vunpack.c.l.b16 %v357
    %v406 = vunpack.c.l.b16 %v358
    %v407 = vunpack.c.l.b16 %v359
    %v408 = vunpack.c.l.b16 %v360
    %v409 = vunpack.c.l.b16 %v361
    %v410 = vunpack.c.l.b16 %v362
    %v411 = vunpack.c.l.b16 %v363
    %v412 = vunpack.c.l.b16 %v364
    %v413 = vunpack.c.l.b16 %v365
    %v414 = vunpack.c.l.b16 %v366
    %v415 = vunpack.c.l.b16 %v367
    %v416 = vunpack.c.l.b16 %v368
    %v417 = vunpack.c.l.b16 %v369
    %v418 = vpack.c.b16 %v395, %v394
    %v419 = vpack.c.b16 %v397, %v396
    %v420 = vpack.c.b16 %v399, %v398
    %v421 = vpack.c.b16 %v401, %v400
    %v422 = vpack.c.b16 %v403, %v402
    %v423 = vpack.c.b16 %v405, %v404
    %v424 = vpack.c.b16 %v407, %v406
    %v425 = vpack.c.b16 %v409, %v408
    %v426 = vpack.c.b16 %v411, %v410
    %v427 = vpack.c.b16 %v413, %v412
    %v428 = vpack.c.b16 %v415, %v414
    %v429 = vpack.c.b16 %v417, %v416
    %v443 = vsel %vm207, %v343, 0
    %v446 = vsel %vm207, %v345, 0
    %448 = vmatprep.subr.bf16.mxu0 0
    %449 = vmatpush1.bf16.msra.mxu0 %v418
    %450 = vmatprep.subr.bf16.mxu0 0
    %451 = vmatpush1.bf16.msra.mxu0 %v419
    %452 = vmatprep.subr.bf16.mxu0 0
    %453 = vmatpush1.bf16.msra.mxu0 %v420
    %454 = vmatprep.subr.bf16.mxu0 0
    %455 = vmatpush1.bf16.msra.mxu0 %v421
    %456 = vmatprep.subr.bf16.mxu0 0
    %457 = vmatpush1.bf16.msra.mxu0 %v422
    %458 = vmatprep.subr.bf16.mxu0 0
    %459 = vmatpush1.bf16.msra.mxu0 %v423
    %460 = vmatprep.subr.bf16.mxu0 0
    %461 = vmatpush1.bf16.msra.mxu0 %v424
    %462 = vmatprep.subr.bf16.mxu0 0
    %463 = vmatpush1.bf16.msra.mxu0 %v425
    %464 = vmatprep.subr.bf16.mxu0 0
    %465 = vmatpush1.bf16.msra.mxu0 %v426
    %466 = vmatprep.subr.bf16.mxu0 0
    %467 = vmatpush1.bf16.msra.mxu0 %v427
    %468 = vmatprep.subr.bf16.mxu0 0
    %469 = vmatpush1.bf16.msra.mxu0 %v428
    %470 = vmatprep.subr.bf16.mxu0 0
    %471 = vmatpush1.bf16.msra.mxu0 %v429
    %472 = vmatprep.subr.bf16.mxu0 0
    %473 = vmatpush1.bf16.msra.mxu0 0
    %474 = vmatprep.subr.bf16.mxu0 0
    %475 = vmatpush1.bf16.msra.mxu0 0
    %476 = vmatprep.subr.bf16.mxu0 0
    %477 = vmatpush1.bf16.msra.mxu0 0
    %478 = vmatprep.subr.bf16.mxu0 0
    %479 = vmatpush1.bf16.msra.mxu0 0
    %480 = vmatprep.mubr.bf16.mxu0 %v443
    %481 = vmatmul.mubr.bf16.gmra.mrb[0].mxu0 %v342
    %v482 = vpop.f32.mrb[0].mxu0
    %v483 = vadd.f32 0.0, %v482
    %v484 = vpop.f32.mrb[0].mxu0
    %v485 = vpop.f32.mrb[0].mxu0
    %v486 = vadd.f32 0.0, %v485
    %v487 = vpop.f32.mrb[0].mxu0
    %488 = vmatprep.mubr.bf16.mxu0 %v446
    %489 = vmatmul.mubr.bf16.gmra.mrb[0].mxu0 %v344
    %v490 = vpop.f32.mrb[0].mxu0
    %v491 = vadd.f32 0.0, %v490
    %v492 = vpop.f32.mrb[0].mxu0
    %v493 = vpop.f32.mrb[0].mxu0
    %v494 = vadd.f32 0.0, %v493
    %v495 = vpop.f32.mrb[0].mxu0
    %496 = vdwg.mxu0
    %v497 = vld [vmem:[%s3 + $0x2] sm:$0x1]
    %v498 = vld [vmem:[%s3 + $0x3] sm:$0x1]
    %v499 = vsel %vm207, %v483, 0.0
    %v500 = vsel %vm207, %v486, 0.0
    %v501 = vadd.f32 %v499, %v500
    %v502 = vsel %vm207, %v491, 0.0
    %v503 = vadd.f32 %v501, %v502
    %v504 = vsel %vm207, %v494, 0.0
    %v505 = vadd.f32 %v503, %v504
    %v506 = vrot.slane %v505, 4
    %v507 = vadd.f32 %v505, %v506
    %v508 = vrot.slane %v507, 2
    %v509 = vadd.f32 %v507, %v508
    %v510 = vrot.slane %v509, 1
    %v511 = vadd.f32 %v509, %v510
    %v512 = vmul.f32 %v511, %v221
    %v513 = vsub.f32 %v483, %v512
    %v514 = vsub.f32 %v486, %v512
    %v515 = vsub.f32 %v491, %v512
    %v516 = vsub.f32 %v494, %v512
    %v517 = vmul.f32 %v513, %v513
    %v518 = vmul.f32 %v514, %v514
    %v519 = vmul.f32 %v515, %v515
    %v520 = vmul.f32 %v516, %v516
    %v521 = vsel %vm207, %v517, 0.0
    %v522 = vsel %vm207, %v518, 0.0
    %v523 = vadd.f32 %v521, %v522
    %v524 = vsel %vm207, %v519, 0.0
    %v525 = vadd.f32 %v523, %v524
    %v526 = vsel %vm207, %v520, 0.0
    %v527 = vadd.f32 %v525, %v526
    %v528 = vrot.slane %v527, 4
    %v529 = vadd.f32 %v527, %v528
    %v530 = vrot.slane %v529, 2
    %v531 = vadd.f32 %v529, %v530
    %v532 = vrot.slane %v531, 1
    %v533 = vadd.f32 %v531, %v532
    %v534 = vmul.f32 %v533, %v221
    %v535 = vadd.f32 %v534, 1e-05
    %v536 = vrsqrt.pop %v535
    %v537 = vmul.f32 %v497, %v536
    %v538 = vlaneseq
    %v539 = vshrl.u32 %v538, 7
    %v540 = vsub.s32 0, %v539
    %v541 = vrot.slane %v537, %v540
    %v542 = vmul.f32 %v513, %v541
    %v543 = vmul.f32 %v514, %v541
    %v544 = vmul.f32 %v515, %v541
    %v545 = vmul.f32 %v516, %v541
    %v546 = vlaneseq
    %v547 = vshrl.u32 %v546, 7
    %v548 = vsub.s32 0, %v547
    %v549 = vrot.slane %v498, %v548
    %v550 = vadd.f32 %v542, %v549
    %v551 = vadd.f32 %v543, %v549
    %v552 = vadd.f32 %v544, %v549
    %v553 = vadd.f32 %v545, %v549
    %v554 = vld [vmem:[#allocation2] sm:$0xff]
    %v555 = vld [vmem:[#allocation2 + $0x8] sm:$0xff]
    %v556 = vld [vmem:[#allocation2 + $0x10] sm:$0xff]
    %v557 = vld [vmem:[#allocation2 + $0x18] sm:$0xff]
    %v558 = vpack.c.bf16 %v555, %v554
    %v559 = vpack.c.bf16 %v557, %v556
    %v560 = vld [vmem:[%s4] sm:$0xf]
    %v561 = vld [vmem:[%s4 + $0x4] sm:$0xf]
    %v562 = vld [vmem:[%s4 + $0x8] sm:$0xf]
    %v563 = vld [vmem:[%s4 + $0xc] sm:$0xf]
    %566 = vrot.lane.b32.xlu0 %v558, 96
    %v567 = vpop.permute.xlu0 %566
    %568 = vrot.lane.b32.xlu0 %v559, 96
    %v569 = vpop.permute.xlu0 %568
    %v574 = vunpack.c.l.b16 %v560
    %v575 = vunpack.c.l.b16 %v561
    %v576 = vunpack.c.l.b16 %v562
    %v577 = vunpack.c.l.b16 %v563
    %v578 = vpack.c.b16 %v575, %v574
    %v579 = vpack.c.b16 %v577, %v576
    %v583 = vsel %vm31, %v567, 0
    %v586 = vsel %vm31, %v569, 0
    %588 = vmatprep.subr.bf16.mxu0 0
    %589 = vmatpush1.bf16.msra.mxu0 %v578
    %590 = vmatprep.subr.bf16.mxu0 0
    %591 = vmatpush1.bf16.msra.mxu0 %v579
    %592 = vmatprep.subr.bf16.mxu0 0
    %593 = vmatpush1.bf16.msra.mxu0 0
    %594 = vmatprep.subr.bf16.mxu0 0
    %595 = vmatpush1.bf16.msra.mxu0 0
    %596 = vmatprep.subr.bf16.mxu0 0
    %597 = vmatpush1.bf16.msra.mxu0 0
    %598 = vmatprep.subr.bf16.mxu0 0
    %599 = vmatpush1.bf16.msra.mxu0 0
    %600 = vmatprep.subr.bf16.mxu0 0
    %601 = vmatpush1.bf16.msra.mxu0 0
    %602 = vmatprep.subr.bf16.mxu0 0
    %603 = vmatpush1.bf16.msra.mxu0 0
    %604 = vmatprep.subr.bf16.mxu0 0
    %605 = vmatpush1.bf16.msra.mxu0 0
    %606 = vmatprep.subr.bf16.mxu0 0
    %607 = vmatpush1.bf16.msra.mxu0 0
    %608 = vmatprep.subr.bf16.mxu0 0
    %609 = vmatpush1.bf16.msra.mxu0 0
    %610 = vmatprep.subr.bf16.mxu0 0
    %611 = vmatpush1.bf16.msra.mxu0 0
    %612 = vmatprep.subr.bf16.mxu0 0
    %613 = vmatpush1.bf16.msra.mxu0 0
    %614 = vmatprep.subr.bf16.mxu0 0
    %615 = vmatpush1.bf16.msra.mxu0 0
    %616 = vmatprep.subr.bf16.mxu0 0
    %617 = vmatpush1.bf16.msra.mxu0 0
    %618 = vmatprep.subr.bf16.mxu0 0
    %619 = vmatpush1.bf16.msra.mxu0 0
    %620 = vmatprep.mubr.bf16.mxu0 0
    %621 = vmatmul.mubr.bf16.gmra.mrb[0].mxu0 %v583
    %v622 = vpop.f32.mrb[0].mxu0
    %v623 = vadd.f32 0.0, %v622
    %v624 = vpop.f32.mrb[0].mxu0
    %v625 = vpop.f32.mrb[0].mxu0
    %v626 = vadd.f32 0.0, %v625
    %v627 = vpop.f32.mrb[0].mxu0
    %628 = vmatprep.mubr.bf16.mxu0 0
    %629 = vmatmul.mubr.bf16.gmra.mrb[0].mxu0 %v586
    %v630 = vpop.f32.mrb[0].mxu0
    %v631 = vadd.f32 0.0, %v630
    %v632 = vpop.f32.mrb[0].mxu0
    %v633 = vpop.f32.mrb[0].mxu0
    %v634 = vadd.f32 0.0, %v633
    %v635 = vpop.f32.mrb[0].mxu0
    %636 = vdwg.mxu0
    %v637 = vld [vmem:[%s5] sm:$0x1]
    %v638 = vld [vmem:[%s5 + $0x1] sm:$0x1]
    %v639 = vsel %vm207, %v623, 0.0
    %v640 = vsel %vm207, %v626, 0.0
    %v641 = vadd.f32 %v639, %v640
    %v642 = vsel %vm207, %v631, 0.0
    %v643 = vadd.f32 %v641, %v642
    %v644 = vsel %vm207, %v634, 0.0
    %v645 = vadd.f32 %v643, %v644
    %v646 = vrot.slane %v645, 4
    %v647 = vadd.f32 %v645, %v646
    %v648 = vrot.slane %v647, 2
    %v649 = vadd.f32 %v647, %v648
    %v650 = vrot.slane %v649, 1
    %v651 = vadd.f32 %v649, %v650
    %v652 = vmul.f32 %v651, %v221
    %v653 = vsub.f32 %v623, %v652
    %v654 = vsub.f32 %v626, %v652
    %v655 = vsub.f32 %v631, %v652
    %v656 = vsub.f32 %v634, %v652
    %v657 = vmul.f32 %v653, %v653
    %v658 = vmul.f32 %v654, %v654
    %v659 = vmul.f32 %v655, %v655
    %v660 = vmul.f32 %v656, %v656
    %v661 = vsel %vm207, %v657, 0.0
    %v662 = vsel %vm207, %v658, 0.0
    %v663 = vadd.f32 %v661, %v662
    %v664 = vsel %vm207, %v659, 0.0
    %v665 = vadd.f32 %v663, %v664
    %v666 = vsel %vm207, %v660, 0.0
    %v667 = vadd.f32 %v665, %v666
    %v668 = vrot.slane %v667, 4
    %v669 = vadd.f32 %v667, %v668
    %v670 = vrot.slane %v669, 2
    %v671 = vadd.f32 %v669, %v670
    %v672 = vrot.slane %v671, 1
    %v673 = vadd.f32 %v671, %v672
    %v674 = vmul.f32 %v673, %v221
    %v675 = vadd.f32 %v674, 1e-05
    %v676 = vrsqrt.pop %v675
    %v677 = vmul.f32 %v637, %v676
    %v678 = vlaneseq
    %v679 = vshrl.u32 %v678, 7
    %v680 = vsub.s32 0, %v679
    %v681 = vrot.slane %v677, %v680
    %v682 = vmul.f32 %v653, %v681
    %v683 = vmul.f32 %v654, %v681
    %v684 = vmul.f32 %v655, %v681
    %v685 = vmul.f32 %v656, %v681
    %v686 = vlaneseq
    %v687 = vshrl.u32 %v686, 7
    %v688 = vsub.s32 0, %v687
    %v689 = vrot.slane %v638, %v688
    %v690 = vadd.f32 %v682, %v689
    %v691 = vadd.f32 %v683, %v689
    %v692 = vadd.f32 %v684, %v689
    %v693 = vadd.f32 %v685, %v689
    %v694 = vadd.f32 %v550, %v690
    %v695 = vadd.f32 %v551, %v691
    %v696 = vadd.f32 %v552, %v692
    %v697 = vadd.f32 %v553, %v693
    %vm698 = vcmp.gt.f32.partialorder %v694, 0.0
    %vm699 = vcmp.gt.f32.partialorder %v695, 0.0
    %vm700 = vcmp.gt.f32.partialorder %v696, 0.0
    %vm701 = vcmp.gt.f32.partialorder %v697, 0.0
    %v702 = vmul.f32 %v694, 0.01
    %v703 = vmul.f32 %v695, 0.01
    %v704 = vmul.f32 %v696, 0.01
    %v705 = vmul.f32 %v697, 0.01
    %v706 = vsel %vm698, %v694, %v702
    %v707 = vsel %vm699, %v695, %v703
    %v708 = vsel %vm700, %v696, %v704
    %v709 = vsel %vm701, %v697, %v705
    %710 = vst.msk [vmem:[#allocation4] sm:$0xff] %vm207, %v706
    %711 = vst.msk [vmem:[#allocation4 + $0x8] sm:$0xff] %vm207, %v707
    %712 = vst.msk [vmem:[#allocation4 + $0x10] sm:$0xff] %vm207, %v708
    %713 = vst.msk [vmem:[#allocation4 + $0x18] sm:$0xff] %vm207, %v709
    // Predicated region
    $region26: #{tpu_custom_call.1} parent=1 // pred_check
      _
    $region27: #{tpu_custom_call.1} parent=1 // pred_check_branch
      %715 = sbr.rel (0) target = $region29
    $region28: #{tpu_custom_call.1} parent=1 // pred_region
      %s717 = ssub.s32 512, 512
      %718 = vsyncadd [#allocation5], %s717
      %s719 = sshll.u32 [#allocation4], 4
      %s720 = int_to_ptr.vmem [resolvable:$true] %s719
      %725 = dma.vmem_to_hbm [thread:$0]  %s720, 512, %s6, [#allocation5], 128, 128, 8
    $region29: #{tpu_custom_call.1} parent=1 // pred_fallthru
      _
    // Predicated region
    $region30: #{tpu_custom_call.1} parent=1 // pred_check
      _
    $region31: #{tpu_custom_call.1} parent=1 // pred_check_branch
      %727 = sbr.rel (0) target = $region33
    $region32: #{tpu_custom_call.1} parent=1 // pred_region
      %728 = dma.done [#allocation5], 512
    $region33: #{tpu_custom_call.1} parent=1 // pred_fallthru
      _
    %729 = vsyncpa [#allocation5], 1

</llo_original>
